<compile_context>
chip_gen: v7x
topology: tpu7x:2x2x1
jax: 0.10.0
libtpu: 0.0.40
codegen_flags: <defaults>
</compile_context>

<pallas_src>
import functools
import math

import jax
import jax.numpy as jnp
from jax import lax
from jax.experimental import pallas as pl
from jax.experimental.pallas import tpu as pltpu


def _round_up(x, m):
    return (x + m - 1) // m * m


def _sublane(dtype):
    # Sublane granularity for the second-to-last dim of a block of this dtype.
    return {4: 8, 2: 16, 1: 32}[jnp.dtype(dtype).itemsize]


# ----------------------------- Linear kernel --------------------------------
def linear_kernel(x_ref, w_ref, b_ref, o_ref, acc_ref):
    # Blocks: x (tm, tk), w (tk, tn), b (1, tn), o (tm, tn); acc (tm, tn) f32.
    @pl.when(pl.program_id(2) == 0)
    def _():
        acc_ref[...] = jnp.zeros_like(acc_ref)

    # bf16 MXU operands, f32 accumulation (bf16 is MXU-native on v5e/v6e/v7x).
    acc_ref[...] += jnp.dot(x_ref[...].astype(jnp.bfloat16),
                            w_ref[...].astype(jnp.bfloat16),
                            preferred_element_type=jnp.float32)

    @pl.when(pl.program_id(2) == pl.num_programs(2) - 1)
    def _():
        o_ref[...] = (acc_ref[...] +
                      b_ref[...].astype(jnp.float32)).astype(o_ref.dtype)


def linear(x2d, w, b, *, out_dtype=None, tm_nom=512, tn_nom=512, tk_nom=512):
    """x2d (M,K) @ w (K,N) + b (N,) -> (M,N).  Tiled/pipelined, f32 accumulate."""
    if out_dtype is None:
        out_dtype = x2d.dtype
    M, K = x2d.shape
    N = w.shape[1]

    # Tile sizes clamped to (padded) problem size; respect sublane/lane tiling.
    gm = max(_sublane(x2d.dtype), _sublane(out_dtype))
    tm = min(tm_nom, _round_up(M, gm))
    tn = min(tn_nom, _round_up(N, 128))
    tk = min(tk_nom, _round_up(K, 128))
    Mp, Kp, Np = _round_up(M, tm), _round_up(K, tk), _round_up(N, tn)

    xp = x2d if (Mp, Kp) == (M, K) else jnp.pad(x2d, ((0, Mp - M), (0, Kp - K)))
    wp = w if (Kp, Np) == (K, N) else jnp.pad(w, ((0, Kp - K), (0, Np - N)))
    bp = b if Np == N else jnp.pad(b, (0, Np - N))

    grid = (Mp // tm, Np // tn, Kp // tk)
    esz = lambda a: jnp.dtype(a.dtype).itemsize
    cost = pl.CostEstimate(
        flops=2 * Mp * Np * Kp,
        transcendentals=0,
        bytes_accessed=(esz(xp) * Mp * Kp + esz(wp) * Kp * Np
                        + jnp.dtype(out_dtype).itemsize * Mp * Np
                        + esz(bp) * Np),
    )

    out = pl.pallas_call(
        linear_kernel,
        out_shape=jax.ShapeDtypeStruct((Mp, Np), out_dtype),
        grid_spec=pltpu.PrefetchScalarGridSpec(
            num_scalar_prefetch=0,
            grid=grid,
            in_specs=[
                pl.BlockSpec((tm, tk), lambda i, j, k: (i, k)),
                pl.BlockSpec((tk, tn), lambda i, j, k: (k, j)),
                pl.BlockSpec((1, tn), lambda i, j, k: (0, j)),
            ],
            out_specs=pl.BlockSpec((tm, tn), lambda i, j, k: (i, j)),
            scratch_shapes=[pltpu.VMEM((tm, tn), jnp.float32)],
        ),
        compiler_params=pltpu.CompilerParams(
            dimension_semantics=("parallel", "parallel", "arbitrary"),
            vmem_limit_bytes=32 * 1024 * 1024,
        ),
        cost_estimate=cost,
    )(xp, wp, bp.reshape(1, Np))

    return out if (Mp, Np) == (M, N) else out[:M, :N]


# ---------------- Flash attention + fused output projection ------------------
def attn_kernel(q_ref, kv_ref, wo_ref, bo_ref, o_ref, m_sc, l_sc, acc_sc,
                *, n_heads, lkv_valid, tkv, needs_mask):
    # Blocks: q (1, tq, d_embed) bf16 (scale pre-folded into the Q weights),
    #         kv (1, tkv, 2*d_embed) bf16, wo (d_embed, d_embed) bf16,
    #         bo (1, d_embed) f32, o (1, tq, d_embed) f32.
    # Scratch: m/l (n_heads, tq, 1) f32, acc (tq, d_embed) f32.
    j = pl.program_id(2)
    d_embed = q_ref.shape[-1]
    dh = d_embed // n_heads

    @pl.when(j == 0)
    def _():
        m_sc[...] = jnp.full_like(m_sc, -jnp.inf)
        l_sc[...] = jnp.zeros_like(l_sc)
        acc_sc[...] = jnp.zeros_like(acc_sc)

    if needs_mask:  # static: only emitted when Lkv was padded to a tile multiple
        col = lax.broadcasted_iota(jnp.int32, (1, tkv), 1)
        mask_bias = jnp.where(j * tkv + col < lkv_valid, 0.0,
                              -1e30).astype(jnp.float32)

    # n_heads is a small static constant -> unrolled; per-head 2-D matmuls.
    for h in range(n_heads):
        lo, hi = h * dh, (h + 1) * dh
        qh = q_ref[0, :, lo:hi]                        # (tq, dh)   bf16
        kh = kv_ref[0, :, lo:hi]                       # (tkv, dh)  bf16
        vh = kv_ref[0, :, d_embed + lo:d_embed + hi]   # (tkv, dh)  bf16

        # q @ k^T contracting dh directly (no materialized k.T); f32 scores.
        s = lax.dot_general(qh, kh, (((1,), (1,)), ((), ())),
                            preferred_element_type=jnp.float32)  # (tq, tkv)
        if needs_mask:
            s = s + mask_bias

        m_prev = m_sc[h]                                          # (tq, 1)
        m_new = jnp.maximum(m_prev, jnp.max(s, axis=-1, keepdims=True))
        alpha = jnp.exp(m_prev - m_new)
        p = jnp.exp(s - m_new)                                    # f32
        l_sc[h] = alpha * l_sc[h] + jnp.sum(p, axis=-1, keepdims=True)
        m_sc[h] = m_new
        # Un-normalized PV accumulation, streamed per head into VMEM scratch.
        acc_sc[:, lo:hi] = alpha * acc_sc[:, lo:hi] + jnp.dot(
            p.astype(jnp.bfloat16), vh, preferred_element_type=jnp.float32)

    @pl.when(j == pl.num_programs(2) - 1)
    def _():
        # Normalize AFTER PV: tq*dh multiplies per head, not tq*Lkv.
        for h in range(n_heads):
            lo, hi = h * dh, (h + 1) * dh
            inv = pl.reciprocal(l_sc[h], approx=False)            # exact
            acc_sc[:, lo:hi] = acc_sc[:, lo:hi] * inv
        # Fused output projection + single lane-dense (tq, d_embed) store.
        o_t = acc_sc[...].astype(jnp.bfloat16)
        out = jnp.dot(o_t, wo_ref[...], preferred_element_type=jnp.float32)
        o_ref[0] = (out + bo_ref[...].astype(jnp.float32)).astype(o_ref.dtype)


def attention_out_proj(q, kv, wo_bf, bo, n_heads, *, out_dtype=jnp.float32,
                       tq_nom=256, tkv_nom=512):
    """q: (B, Lq, d_embed) bf16 (scale folded in), kv: (B, Lkv, 2*d_embed) bf16.

    Returns out_proj(softmax(q kᵀ) v): (B, Lq, d_embed) in out_dtype.
    Heads live inside the feature axis; no head split/merge transposes.
    """
    B, Lq, d_embed = q.shape
    Lkv = kv.shape[1]

    tq = min(tq_nom, _round_up(Lq, 8))
    tkv = min(tkv_nom, _round_up(Lkv, 8))
    Lqp, Lkvp = _round_up(Lq, tq), _round_up(Lkv, tkv)
    if Lqp != Lq:
        q = jnp.pad(q, ((0, 0), (0, Lqp - Lq), (0, 0)))
    if Lkvp != Lkv:
        kv = jnp.pad(kv, ((0, 0), (0, Lkvp - Lkv), (0, 0)))
    needs_mask = Lkvp != Lkv

    kernel = functools.partial(attn_kernel, n_heads=n_heads, lkv_valid=Lkv,
                               tkv=tkv, needs_mask=needs_mask)
    cost = pl.CostEstimate(
        flops=4 * B * Lqp * Lkvp * d_embed + 2 * B * Lqp * d_embed * d_embed,
        transcendentals=B * n_heads * Lqp * Lkvp,
        bytes_accessed=2 * (B * Lqp * d_embed + 2 * B * Lkvp * d_embed
                            + d_embed * d_embed) + 4 * B * Lqp * d_embed,
    )

    out = pl.pallas_call(
        kernel,
        out_shape=jax.ShapeDtypeStruct((B, Lqp, d_embed), out_dtype),
        grid_spec=pltpu.PrefetchScalarGridSpec(
            num_scalar_prefetch=0,
            grid=(B, Lqp // tq, Lkvp // tkv),
            in_specs=[
                pl.BlockSpec((1, tq, d_embed), lambda b, i, j: (b, i, 0)),
                pl.BlockSpec((1, tkv, 2 * d_embed), lambda b, i, j: (b, j, 0)),
                pl.BlockSpec((d_embed, d_embed), lambda b, i, j: (0, 0)),
                pl.BlockSpec((1, d_embed), lambda b, i, j: (0, 0)),
            ],
            out_specs=pl.BlockSpec((1, tq, d_embed), lambda b, i, j: (b, i, 0)),
            scratch_shapes=[
                pltpu.VMEM((n_heads, tq, 1), jnp.float32),   # running row max
                pltpu.VMEM((n_heads, tq, 1), jnp.float32),   # running denom
                pltpu.VMEM((tq, d_embed), jnp.float32),      # running PV acc
            ],
        ),
        compiler_params=pltpu.CompilerParams(
            dimension_semantics=("parallel", "parallel", "arbitrary"),
            vmem_limit_bytes=32 * 1024 * 1024,   # flash-tiled: small working set
        ),
        cost_estimate=cost,
    )(q, kv, wo_bf, bo.reshape(1, d_embed))

    return out if Lqp == Lq else out[:, :Lq, :]


# ------------------------------ Full module ----------------------------------
def cross_attention(x, y, params, n_heads):
    """Forward pass identical to the PyTorch CrossAttention module.

    x: (B, Lq, d_embed), y: (B, Lkv, d_cross) -> (B, Lq, d_embed)
    params: dict with 'wq','bq','wk','bk','wv','bv','wo','bo'
            (weights stored as (in_features, out_features)).
    """
    B, Lq, d_embed = x.shape
    Lkv = y.shape[1]
    d_head = d_embed // n_heads
    scale = 1.0 / math.sqrt(d_head)

    # Fold the 1/sqrt(d_head) softmax scale into the Q projection (exact up to
    # float re-association) and pre-cast weights to bf16 once.
    wq = (params["wq"] * scale).astype(jnp.bfloat16)
    bq = params["bq"] * scale
    wkv = jnp.concatenate([params["wk"], params["wv"]], axis=1).astype(jnp.bfloat16)
    bkv = jnp.concatenate([params["bk"], params["bv"]], axis=0)
    wo = params["wo"].astype(jnp.bfloat16)

    # Q projection and fused K/V projection (one pass over y, wider N).
    # bf16 activations -> half the attention kernel's HBM/VMEM traffic.
    q = linear(x.reshape(B * Lq, d_embed), wq, bq, out_dtype=jnp.bfloat16)
    kv = linear(y.reshape(B * Lkv, -1), wkv, bkv, out_dtype=jnp.bfloat16)

    # Keep (B, L, features) layout — heads handled inside the attention kernel,
    # K/V sliced per head inside the kernel from the fused KV operand.
    q = q.reshape(B, Lq, d_embed)
    kv = kv.reshape(B, Lkv, 2 * d_embed)

    # Flash attention with the output projection fused into its finalize.
    out = attention_out_proj(q, kv, wo, params["bo"], n_heads,
                             out_dtype=x.dtype)
    return out


# ---------------------------- Reference (pure JAX) ----------------------------
def cross_attention_ref(x, y, params, n_heads):
    B, Lq, d_embed = x.shape
    Lkv = y.shape[1]
    d_head = d_embed // n_heads
    q = x @ params["wq"] + params["bq"]
    k = y @ params["wk"] + params["bk"]
    v = y @ params["wv"] + params["bv"]
    q = q.reshape(B, Lq, n_heads, d_head).transpose(0, 2, 1, 3)
    k = k.reshape(B, Lkv, n_heads, d_head).transpose(0, 2, 1, 3)
    v = v.reshape(B, Lkv, n_heads, d_head).transpose(0, 2, 1, 3)
    w = jnp.einsum("bhqd,bhkd->bhqk", q, k) / math.sqrt(d_head)
    w = jax.nn.softmax(w, axis=-1)
    o = jnp.einsum("bhqk,bhkd->bhqd", w, v)
    o = o.transpose(0, 2, 1, 3).reshape(B, Lq, d_embed)
    return o @ params["wo"] + params["bo"]


# ---------------------------------- Main --------------------------------------
if __name__ == "__main__":
    # Small shapes consistent with the module.
    B, Lq, Lkv = 2, 8, 12
    d_embed, d_cross, n_heads = 32, 16, 4

    key = jax.random.PRNGKey(0)
    ks = jax.random.split(key, 10)

    def init_linear(kw, kb, fan_in, fan_out):
        bound = 1.0 / math.sqrt(fan_in)
        w = jax.random.uniform(kw, (fan_in, fan_out), jnp.float32, -bound, bound)
        b = jax.random.uniform(kb, (fan_out,), jnp.float32, -bound, bound)
        return w, b

    wq, bq = init_linear(ks[0], ks[1], d_embed, d_embed)
    wk, bk = init_linear(ks[2], ks[3], d_cross, d_embed)
    wv, bv = init_linear(ks[4], ks[5], d_cross, d_embed)
    wo, bo = init_linear(ks[6], ks[7], d_embed, d_embed)
    params = dict(wq=wq, bq=bq, wk=wk, bk=bk, wv=wv, bv=bv, wo=wo, bo=bo)

    x = jax.random.normal(ks[8], (B, Lq, d_embed), jnp.float32)
    y = jax.random.normal(ks[9], (B, Lkv, d_cross), jnp.float32)

    out = cross_attention(x, y, params, n_heads)
    out = jax.block_until_ready(out)

    ref = cross_attention_ref(x, y, params, n_heads)
    assert out.shape == (B, Lq, d_embed)
    # Tolerance accounts for bf16 MXU operands (f32 accumulation) vs the f32
    # reference; observed error is ~1e-3-level at these scales.
    assert jnp.allclose(out, ref, atol=2e-2, rtol=2e-2), "mismatch vs reference"

    print("KERNEL_OK")
</pallas_src>

<mosaic_0001>
module attributes {stable_mosaic.version = 11 : i64} {
  func.func @linear_kernel(%arg0: i32, %arg1: i32, %arg2: i32, %arg3: memref<16x128xf32, #tpu.memory_space<vmem>>, %arg4: memref<128x128xbf16, #tpu.memory_space<vmem>>, %arg5: memref<1x128xf32, #tpu.memory_space<vmem>>, %arg6: memref<16x128xbf16, #tpu.memory_space<vmem>>, %arg7: memref<16x128xf32, #tpu.memory_space<vmem>>) attributes {dimension_semantics = [#tpu.dimension_semantics<parallel>, #tpu.dimension_semantics<parallel>, #tpu.dimension_semantics<arbitrary>], iteration_bounds = array<i64: 1, 1, 1>, scalar_prefetch = 0 : i64, scratch_operands = 1 : i64, tpu.core_type = #tpu.core_type<tc>, window_params = [{transform_indices = @transform_0, window_bounds = array<i64: 16, 128>}, {transform_indices = @transform_1, window_bounds = array<i64: 128, 128>}, {transform_indices = @transform_2, window_bounds = array<i64: 1, 128>}, {transform_indices = @transform_3, window_bounds = array<i64: 16, 128>}]} {
    %c0_i32 = arith.constant 0 : i32
    %0 = arith.cmpi eq, %arg2, %c0_i32 : i32
    %1 = arith.extui %0 : i1 to i32
    %c0_i32_0 = arith.constant 0 : i32
    %2 = arith.cmpi ne, %1, %c0_i32_0 : i32
    scf.if %2 {
      %cst_10 = arith.constant 0.000000e+00 : f32
      %13 = vector.broadcast %cst_10 : f32 to vector<16x128xf32>
      %c0_11 = arith.constant 0 : index
      %c0_12 = arith.constant 0 : index
      %14 = vector.load %arg7[%c0_11, %c0_12] : memref<16x128xf32, #tpu.memory_space<vmem>>, vector<16x128xf32>
      tpu.vector_store %arg7[%c0_11, %c0_12], %13 {strides = array<i32>} : memref<16x128xf32, #tpu.memory_space<vmem>>, vector<16x128xf32>,
    } else {
    }
    %c0 = arith.constant 0 : index
    %c0_1 = arith.constant 0 : index
    %3 = vector.load %arg7[%c0, %c0_1] : memref<16x128xf32, #tpu.memory_space<vmem>>, vector<16x128xf32>
    %c0_2 = arith.constant 0 : index
    %c0_3 = arith.constant 0 : index
    %4 = vector.load %arg3[%c0_2, %c0_3] : memref<16x128xf32, #tpu.memory_space<vmem>>, vector<16x128xf32>
    %5 = arith.truncf %4 : vector<16x128xf32> to vector<16x128xbf16>
    %c0_4 = arith.constant 0 : index
    %c0_5 = arith.constant 0 : index
    %6 = vector.load %arg4[%c0_4, %c0_5] : memref<128x128xbf16, #tpu.memory_space<vmem>>, vector<128x128xbf16>
    %cst = arith.constant dense<0.000000e+00> : vector<16x128xf32>
    %7 = tpu.matmul %5, %6, %cst {dimension_numbers = #tpu.dot_dimension_numbers<[1], [0], [0], [1], [0, 0, 1, 1], [], []>} : vector<16x128xbf16>, vector<128x128xbf16>, vector<16x128xf32> -> vector<16x128xf32>
    %8 = arith.addf %3, %7 : vector<16x128xf32>
    %c0_6 = arith.constant 0 : index
    %c0_7 = arith.constant 0 : index
    %9 = vector.load %arg7[%c0_6, %c0_7] : memref<16x128xf32, #tpu.memory_space<vmem>>, vector<16x128xf32>
    tpu.vector_store %arg7[%c0_6, %c0_7], %8 {strides = array<i32>} : memref<16x128xf32, #tpu.memory_space<vmem>>, vector<16x128xf32>,
    %c0_i32_8 = arith.constant 0 : i32
    %10 = arith.cmpi eq, %arg2, %c0_i32_8 : i32
    %11 = arith.extui %10 : i1 to i32
    %c0_i32_9 = arith.constant 0 : i32
    %12 = arith.cmpi ne, %11, %c0_i32_9 : i32
    scf.if %12 {
      %c0_10 = arith.constant 0 : index
      %c0_11 = arith.constant 0 : index
      %13 = vector.load %arg7[%c0_10, %c0_11] : memref<16x128xf32, #tpu.memory_space<vmem>>, vector<16x128xf32>
      %c0_12 = arith.constant 0 : index
      %c0_13 = arith.constant 0 : index
      %14 = vector.load %arg5[%c0_12, %c0_13] : memref<1x128xf32, #tpu.memory_space<vmem>>, vector<1x128xf32>
      %15 = vector.broadcast %14 : vector<1x128xf32> to vector<16x128xf32>
      %16 = arith.addf %13, %15 : vector<16x128xf32>
      %17 = arith.truncf %16 : vector<16x128xf32> to vector<16x128xbf16>
      %c0_14 = arith.constant 0 : index
      %c0_15 = arith.constant 0 : index
      %18 = vector.load %arg6[%c0_14, %c0_15] : memref<16x128xbf16, #tpu.memory_space<vmem>>, vector<16x128xbf16>
      tpu.vector_store %arg6[%c0_14, %c0_15], %17 {strides = array<i32>} : memref<16x128xbf16, #tpu.memory_space<vmem>>, vector<16x128xbf16>,
    } else {
    }
    return
  }
  func.func @transform_0(%arg0: i32, %arg1: i32, %arg2: i32) -> (i32, i32) {
    %c0_i32 = arith.constant 0 : i32
    return %arg0, %arg2 : i32, i32
  }
  func.func @transform_1(%arg0: i32, %arg1: i32, %arg2: i32) -> (i32, i32) {
    %c0_i32 = arith.constant 0 : i32
    return %arg2, %arg1 : i32, i32
  }
  func.func @transform_2(%arg0: i32, %arg1: i32, %arg2: i32) -> (i32, i32) {
    %c0_i32 = arith.constant 0 : i32
    %c0_i32_0 = arith.constant 0 : i32
    return %c0_i32, %arg1 : i32, i32
  }
  func.func @transform_3(%arg0: i32, %arg1: i32, %arg2: i32) -> (i32, i32) {
    %c0_i32 = arith.constant 0 : i32
    return %arg0, %arg1 : i32, i32
  }
}

</mosaic_0001>

<llo_original>
// kernel: tpu_custom_call.1
$region0: #{tpu_custom_call.1}
  #allocation0 [shape = 'u32[]', space=smem, size = 0x4, offset = 0x4, fixed_abs, tag = 'smem constant byte address 0x4 - core index']
  #allocation1 [shape = 'u32[144,128]{1,0:T(1,128)}', space=vmem, size = 0x12000, scoped, tag = 'internal scratch']
  #allocation2 [shape = 'f32[16,128]{1,0:T(8,128)}', space=vmem, size = 0x2000, scoped, tag = 'scratch operand']
  %s0 = inlined_call_operand.hbm [shape: f32[16,128], index: 0, kind: input, shape index: {}]
  %s1 = inlined_call_operand.hbm [shape: bf16[128,128], index: 1, kind: input, shape index: {}]
  %s2 = inlined_call_operand.vmem [shape: f32[1,128], index: 2, kind: input, shape index: {}]
  %s3 = inlined_call_operand.hbm [shape: bf16[16,128], index: 3, kind: output, shape index: {}]
  %s4 = sld [smem:[#allocation0]]
  $region38: #{tpu_custom_call.1} parent=0
    _
  %s6 = ssub.s32 1, %s4
  %s7 = scalar_select 0, %s6, %s4
  $region1: #{tpu_custom_call.1} parent=0
    #allocation3 [shape = 'u8[8192]{0}', space=vmem, size = 0x2000, scoped, tag = 'input window, operand 0, single buffered']
    #allocation4 [shape = 's32[1]{0}', space=sflag, size = 0x4, scoped, tag = 'scoped memory for tpu_custom_call.1']
    #allocation5 [shape = 's32[1]{0}', space=sflag, size = 0x4, scoped, tag = 'scoped memory for tpu_custom_call.1']
    #allocation6 [shape = 'u8[32768]{0}', space=vmem, size = 0x8000, scoped, tag = 'input window, operand 1, single buffered']
    #allocation7 [shape = 's32[1]{0}', space=sflag, size = 0x4, scoped, tag = 'scoped memory for tpu_custom_call.1']
    #allocation8 [shape = 'u8[4096]{0}', space=vmem, size = 0x1000, scoped, tag = 'output window, operand 0, single buffered']
    %8 = vsyncpa [#allocation4], 0
    %9 = vsyncpa [#allocation7], 0
    %10 = vsyncpa [#allocation5], 0
    // Predicated region
    $region2: #{tpu_custom_call.1} parent=1 // pred_check
      _
    $region3: #{tpu_custom_call.1} parent=1 // pred_check_branch
      %12 = sbr.rel (0) target = $region5
    $region4: #{tpu_custom_call.1} parent=1 // pred_region
      %s14 = ssub.s32 256, 256
      %15 = vsyncadd [#allocation4], %s14
      %s16 = sshll.u32 [#allocation3], 4
      %s17 = int_to_ptr.vmem [resolvable:$true] %s16
      %22 = dma.hbm_to_vmem [thread:$0]  %s0, 256, %s17, [#allocation4], 128, 128, 8
    $region5: #{tpu_custom_call.1} parent=1 // pred_fallthru
      _
    // Predicated region
    $region6: #{tpu_custom_call.1} parent=1 // pred_check
      _
    $region7: #{tpu_custom_call.1} parent=1 // pred_check_branch
      %24 = sbr.rel (0) target = $region9
    $region8: #{tpu_custom_call.1} parent=1 // pred_region
      %s26 = ssub.s32 1024, 1024
      %27 = vsyncadd [#allocation7], %s26
      %s28 = sshll.u32 [#allocation6], 4
      %s29 = int_to_ptr.vmem [resolvable:$true] %s28
      %34 = dma.hbm_to_vmem [thread:$0]  %s1, 1024, %s29, [#allocation7], 64, 64, 4
    $region9: #{tpu_custom_call.1} parent=1 // pred_fallthru
      _
    // Predicated region
    $region10: #{tpu_custom_call.1} parent=1 // pred_check
      _
    $region11: #{tpu_custom_call.1} parent=1 // pred_check_branch
      %36 = sbr.rel (0) target = $region13
    $region12: #{tpu_custom_call.1} parent=1 // pred_region
      _
    $region13: #{tpu_custom_call.1} parent=1 // pred_fallthru
      _
    // Predicated region
    $region14: #{tpu_custom_call.1} parent=1 // pred_check
      _
    $region15: #{tpu_custom_call.1} parent=1 // pred_check_branch
      %38 = sbr.rel (0) target = $region17
    $region16: #{tpu_custom_call.1} parent=1 // pred_region
      %39 = dma.done [#allocation4], 256
    $region17: #{tpu_custom_call.1} parent=1 // pred_fallthru
      _
    // Predicated region
    $region18: #{tpu_custom_call.1} parent=1 // pred_check
      _
    $region19: #{tpu_custom_call.1} parent=1 // pred_check_branch
      %41 = sbr.rel (0) target = $region21
    $region20: #{tpu_custom_call.1} parent=1 // pred_region
      %42 = dma.done [#allocation7], 1024
    $region21: #{tpu_custom_call.1} parent=1 // pred_fallthru
      _
    %p44 = scmp.eq.s32.totalorder 0, 0
    // Predicated region
    $region22: #{tpu_custom_call.1} parent=1 // pred_check
      %p45 = pneg %p44
    $region23: #{tpu_custom_call.1} parent=1 // pred_check_branch
      %47 = sbr.rel (%p45) target = $region25
    $region24: #{tpu_custom_call.1} parent=1 // pred_region
      %48 = vst [vmem:[#allocation2] sm:$0xff] 0.0
      %49 = vst [vmem:[#allocation2 + $0x8] sm:$0xff] 0.0
    $region25: #{tpu_custom_call.1} parent=1 // pred_fallthru
      _
    %v50 = vld [vmem:[#allocation2] sm:$0xff]
    %v51 = vld [vmem:[#allocation2 + $0x8] sm:$0xff]
    %v52 = vld [vmem:[#allocation3] sm:$0xff]
    %v53 = vld [vmem:[#allocation3 + $0x8] sm:$0xff]
    %v54 = vpack.c.bf16 %v53, %v52
    %v55 = vld [vmem:[#allocation6] sm:$0xf]
    %v56 = vld [vmem:[#allocation6 + $0x4] sm:$0xf]
    %v57 = vld [vmem:[#allocation6 + $0x8] sm:$0xf]
    %v58 = vld [vmem:[#allocation6 + $0xc] sm:$0xf]
    %v59 = vld [vmem:[#allocation6 + $0x10] sm:$0xf]
    %v60 = vld [vmem:[#allocation6 + $0x14] sm:$0xf]
    %v61 = vld [vmem:[#allocation6 + $0x18] sm:$0xf]
    %v62 = vld [vmem:[#allocation6 + $0x1c] sm:$0xf]
    %v63 = vld [vmem:[#allocation6 + $0x20] sm:$0xf]
    %v64 = vld [vmem:[#allocation6 + $0x24] sm:$0xf]
    %v65 = vld [vmem:[#allocation6 + $0x28] sm:$0xf]
    %v66 = vld [vmem:[#allocation6 + $0x2c] sm:$0xf]
    %v67 = vld [vmem:[#allocation6 + $0x30] sm:$0xf]
    %v68 = vld [vmem:[#allocation6 + $0x34] sm:$0xf]
    %v69 = vld [vmem:[#allocation6 + $0x38] sm:$0xf]
    %v70 = vld [vmem:[#allocation6 + $0x3c] sm:$0xf]
    %v87 = vunpack.c.l.b16 %v55
    %v88 = vunpack.c.l.b16 %v56
    %v89 = vunpack.c.l.b16 %v57
    %v90 = vunpack.c.l.b16 %v58
    %v91 = vunpack.c.l.b16 %v59
    %v92 = vunpack.c.l.b16 %v60
    %v93 = vunpack.c.l.b16 %v61
    %v94 = vunpack.c.l.b16 %v62
    %v95 = vunpack.c.l.b16 %v63
    %v96 = vunpack.c.l.b16 %v64
    %v97 = vunpack.c.l.b16 %v65
    %v98 = vunpack.c.l.b16 %v66
    %v99 = vunpack.c.l.b16 %v67
    %v100 = vunpack.c.l.b16 %v68
    %v101 = vunpack.c.l.b16 %v69
    %v102 = vunpack.c.l.b16 %v70
    %v103 = vpack.c.b16 %v88, %v87
    %v104 = vpack.c.b16 %v90, %v89
    %v105 = vpack.c.b16 %v92, %v91
    %v106 = vpack.c.b16 %v94, %v93
    %v107 = vpack.c.b16 %v96, %v95
    %v108 = vpack.c.b16 %v98, %v97
    %v109 = vpack.c.b16 %v100, %v99
    %v110 = vpack.c.b16 %v102, %v101
    %119 = vmatprep.subr.bf16.mxu0 0
    %120 = vmatpush1.bf16.msra.mxu0 %v103
    %121 = vmatprep.subr.bf16.mxu0 0
    %122 = vmatpush1.bf16.msra.mxu0 %v104
    %123 = vmatprep.subr.bf16.mxu0 0
    %124 = vmatpush1.bf16.msra.mxu0 %v105
    %125 = vmatprep.subr.bf16.mxu0 0
    %126 = vmatpush1.bf16.msra.mxu0 %v106
    %127 = vmatprep.subr.bf16.mxu0 0
    %128 = vmatpush1.bf16.msra.mxu0 %v107
    %129 = vmatprep.subr.bf16.mxu0 0
    %130 = vmatpush1.bf16.msra.mxu0 %v108
    %131 = vmatprep.subr.bf16.mxu0 0
    %132 = vmatpush1.bf16.msra.mxu0 %v109
    %133 = vmatprep.subr.bf16.mxu0 0
    %134 = vmatpush1.bf16.msra.mxu0 %v110
    %135 = vmatprep.subr.bf16.mxu0 0
    %136 = vmatpush1.bf16.msra.mxu0 0
    %137 = vmatprep.subr.bf16.mxu0 0
    %138 = vmatpush1.bf16.msra.mxu0 0
    %139 = vmatprep.subr.bf16.mxu0 0
    %140 = vmatpush1.bf16.msra.mxu0 0
    %141 = vmatprep.subr.bf16.mxu0 0
    %142 = vmatpush1.bf16.msra.mxu0 0
    %143 = vmatprep.subr.bf16.mxu0 0
    %144 = vmatpush1.bf16.msra.mxu0 0
    %145 = vmatprep.subr.bf16.mxu0 0
    %146 = vmatpush1.bf16.msra.mxu0 0
    %147 = vmatprep.subr.bf16.mxu0 0
    %148 = vmatpush1.bf16.msra.mxu0 0
    %149 = vmatprep.subr.bf16.mxu0 0
    %150 = vmatpush1.bf16.msra.mxu0 0
    %151 = vmatprep.mubr.bf16.mxu0 0
    %152 = vmatmul.mubr.bf16.gmra.mrb[0].mxu0 %v54
    %v153 = vpop.f32.mrb[0].mxu0
    %v154 = vadd.f32 0.0, %v153
    %v155 = vpop.f32.mrb[0].mxu0
    %v156 = vpop.f32.mrb[0].mxu0
    %v157 = vadd.f32 0.0, %v156
    %v158 = vpop.f32.mrb[0].mxu0
    %159 = vdwg.mxu0
    %v160 = vadd.f32 %v50, %v154
    %v161 = vadd.f32 %v51, %v157
    %162 = vst [vmem:[#allocation2] sm:$0xff] %v160
    %163 = vst [vmem:[#allocation2 + $0x8] sm:$0xff] %v161
    // Predicated region
    $region26: #{tpu_custom_call.1} parent=1 // pred_check
      %p164 = pneg %p44
    $region27: #{tpu_custom_call.1} parent=1 // pred_check_branch
      %166 = sbr.rel (%p164) target = $region29
    $region28: #{tpu_custom_call.1} parent=1 // pred_region
      %v167 = vld [vmem:[#allocation2] sm:$0xff]
      %v168 = vld [vmem:[#allocation2 + $0x8] sm:$0xff]
      %v169 = vld [vmem:[%s2] sm:$0x1]
      %v171 = vlaneseq
      %v172 = vshrl.u32 %v171, 7
      %v173 = vsub.s32 0, %v172
      %v174 = vrot.slane %v169, %v173
      %v176 = vadd.f32 %v167, %v174
      %v177 = vadd.f32 %v168, %v174
      %v178 = vpack.c.bf16 %v177, %v176
      %v180 = vunpack.c.l.b16 %v178
      %v181 = vunpack.c.h.b16 %v178
      %v182 = vpack.c.b16 %v180, %v180
      %v183 = vpack.c.b16 %v181, %v181
      %186 = vst [vmem:[#allocation8] sm:$0xf] %v182
      %187 = vst [vmem:[#allocation8 + $0x4] sm:$0xf] %v183
    $region29: #{tpu_custom_call.1} parent=1 // pred_fallthru
      _
    // Predicated region
    $region30: #{tpu_custom_call.1} parent=1 // pred_check
      _
    $region31: #{tpu_custom_call.1} parent=1 // pred_check_branch
      %189 = sbr.rel (0) target = $region33
    $region32: #{tpu_custom_call.1} parent=1 // pred_region
      %s191 = ssub.s32 128, 128
      %192 = vsyncadd [#allocation5], %s191
      %s193 = sshll.u32 [#allocation8], 4
      %s194 = int_to_ptr.vmem [resolvable:$true] %s193
      %199 = dma.vmem_to_hbm [thread:$0]  %s194, 128, %s3, [#allocation5], 64, 64, 4
    $region33: #{tpu_custom_call.1} parent=1 // pred_fallthru
      _
    // Predicated region
    $region34: #{tpu_custom_call.1} parent=1 // pred_check
      _
    $region35: #{tpu_custom_call.1} parent=1 // pred_check_branch
      %201 = sbr.rel (0) target = $region37
    $region36: #{tpu_custom_call.1} parent=1 // pred_region
      %202 = dma.done [#allocation5], 128
    $region37: #{tpu_custom_call.1} parent=1 // pred_fallthru
      _
    %203 = vsyncpa [#allocation4], 1
    %204 = vsyncpa [#allocation7], 1
    %205 = vsyncpa [#allocation5], 1

</llo_original>
